<compile_context>
chip_gen: v7x
topology: tpu7x:2x2x1
jax: 0.10.0
libtpu: 0.0.40
codegen_flags: <defaults>
</compile_context>

<pallas_src>
import functools
import math

import jax
import jax.numpy as jnp
from jax import lax
from jax.experimental import pallas as pl
from jax.experimental.pallas import tpu as pltpu

EPS = 1e-5
NEG_BIG = -1e30   # finite "minus infinity": fully masked rows never produce NaN
HC = 128          # lanes per H chunk in the attention kernel


def _round_up(x, m):
    return (x + m - 1) // m * m


def _tpu_generation():
    try:
        kind = jax.devices()[0].device_kind.lower()
    except Exception:
        return 6
    for g in (7, 6, 5, 4):
        if f"v{g}" in kind:
            return g
    return 6


# ---------------------------------------------------------------------------
# Stage 1: folded BatchNorm (scale/shift precomputed) + q/k/v projections,
# tiled over N rows.
# ---------------------------------------------------------------------------
def bn_proj_kernel(feat_ref, scale_ref, shift_ref, wq_ref, bq_ref, wk_ref,
                   wv_ref, q_ref, k_ref, v_ref, *, mxu_dtype):
    # BN (training-mode batch stats already folded into scale/shift) + dropout
    # p=0.0 (identity).
    feat_n = feat_ref[...] * scale_ref[...] + shift_ref[...]          # [RT, Dp] f32
    fm = feat_n.astype(mxu_dtype)
    q = jnp.dot(fm, wq_ref[...], preferred_element_type=jnp.float32) + bq_ref[...]
    q_ref[...] = q.astype(q_ref.dtype)
    k_ref[...] = jnp.dot(fm, wk_ref[...],
                         preferred_element_type=jnp.float32).astype(k_ref.dtype)
    v_ref[...] = jnp.dot(fm, wv_ref[...],
                         preferred_element_type=jnp.float32).astype(v_ref.dtype)


# ---------------------------------------------------------------------------
# Stage 2: masked edge-softmax attention, flash-style online softmax.
# grid = (dst tiles, src tiles); scores oriented [dst, src].
# ---------------------------------------------------------------------------
def sgat_attn_kernel(counts_ref, k_ref, q_ref, v_ref, mask_ref, we_ref,
                     out_ref, m_sc, l_sc, acc_sc, *, ew_dtype, mxu_dtype):
    j = pl.program_id(0)
    s = pl.program_id(1)
    ns = pl.num_programs(1)

    @pl.when(s == 0)
    def _init():
        m_sc[...] = jnp.full_like(m_sc, -jnp.inf)
        l_sc[...] = jnp.zeros_like(l_sc)
        acc_sc[...] = jnp.zeros_like(acc_sc)

    # Block-sparse skip: fully empty (dst-tile, src-tile) blocks do no work.
    @pl.when(counts_ref[j * ns + s] > 0)
    def _body():
        tj = k_ref.shape[0]
        ti = q_ref.shape[0]
        n_chunks = k_ref.shape[1] // HC

        # e[j, i] = sum_h we[h] * sigmoid(k[j, h] + q[i, h]); chunk H so only
        # a [TJ, TI, HC] intermediate is ever live (EUP-bound sigmoid work).
        def h_chunk(c, e_acc):
            hs = c * HC
            kd = k_ref[:, pl.ds(hs, HC)].astype(ew_dtype)          # [TJ, HC]
            qs = q_ref[:, pl.ds(hs, HC)].astype(ew_dtype)          # [TI, HC]
            wc = we_ref[:, pl.ds(hs, HC)].astype(ew_dtype)         # [1,  HC]
            sg = jax.nn.sigmoid(kd[:, None, :] + qs[None, :, :])   # [TJ, TI, HC]
            return e_acc + jnp.sum(sg * wc[None, :, :], axis=-1,
                                   dtype=jnp.float32)

        e = lax.fori_loop(0, n_chunks, h_chunk,
                          jnp.zeros((tj, ti), jnp.float32), unroll=True)

        edge = mask_ref[...] != 0                                   # int8 -> bool
        e = jnp.where(edge, e, NEG_BIG)

        m_prev = m_sc[...]
        m_new = jnp.maximum(m_prev, jnp.max(e, axis=-1, keepdims=True))
        alpha = jnp.exp(m_prev - m_new)
        # Explicitly zero masked entries: no garbage ever enters l/acc even for
        # rows whose edges live in a later block.
        p = jnp.where(edge, jnp.exp(e - m_new), 0.0)
        l_sc[...] = alpha * l_sc[...] + jnp.sum(p, axis=-1, keepdims=True)
        acc_sc[...] = alpha * acc_sc[...] + jnp.dot(
            p.astype(mxu_dtype), v_ref[...], preferred_element_type=jnp.float32)
        m_sc[...] = m_new

    @pl.when(s == ns - 1)
    def _finalize():
        l = l_sc[...]
        l = jnp.where(l > 0.0, l, 1.0)          # padded dst rows: avoid 0-div
        if ew_dtype == jnp.bfloat16:
            out = acc_sc[...] * pl.reciprocal(l, approx=True)
        else:
            out = acc_sc[...] / l               # exact divide on the f32 path
        out_ref[...] = out.astype(out_ref.dtype)


# ---------------------------------------------------------------------------
# Wrapper
# ---------------------------------------------------------------------------
def sgat_forward(feat, adj, gamma, beta, wq, bq, wk, wv, we, *,
                 tj=128, ti=None, ew_dtype=None, mxu_dtype=None,
                 vmem_limit_bytes=None):
    """adj is [src, dst] with self-loops; returns rst [N, d_out] (float32)."""
    n, d_in = feat.shape
    hid = wq.shape[1]
    d_out = wv.shape[1]

    gen = _tpu_generation()
    if ew_dtype is None:
        # v6e/v7x have bf16 VPU/EUP; v5e does not -> keep elementwise f32.
        ew_dtype = jnp.bfloat16 if gen >= 6 else jnp.float32
    if mxu_dtype is None:
        mxu_dtype = jnp.bfloat16          # bf16 MXU operands are safe everywhere
    if ti is None:
        # Bigger src tile fills the 256x256 MXU on v6e/v7x once the sigmoid
        # chunk is bf16; keep 128 on v5e / f32 paths.
        ti = 256 if (gen >= 6 and ew_dtype == jnp.bfloat16) else 128
    if vmem_limit_bytes is None:
        vmem_limit_bytes = (56 << 20) if gen >= 7 else (100 << 20)

    assert tj % 8 == 0 and ti % 128 == 0

    # Lane-dense padded dims (padding is exact: padded H columns contribute
    # sigmoid(0)*0 = 0, padded Din columns contribute 0 to the projections).
    d_in_pad = _round_up(d_in, 128)
    h_pad = _round_up(hid, HC)
    o_pad = _round_up(d_out, 128)
    n_pad = _round_up(n, math.lcm(tj, ti))

    # ---- BN batch statistics folded into scale/shift (tiny reduction, XLA). ----
    # TODO(synk): fold this reduction into a tiled Pallas pre-pass for huge N.
    mean = jnp.mean(feat, axis=0, keepdims=True)
    var = jnp.mean(jnp.square(feat - mean), axis=0, keepdims=True)
    scale = gamma / jnp.sqrt(var + EPS)                    # [1, Din]
    shift = beta - mean * scale                             # [1, Din]

    feat_p = jnp.pad(feat, ((0, n_pad - n), (0, d_in_pad - d_in)))
    scale_p = jnp.pad(scale, ((0, 0), (0, d_in_pad - d_in)))
    shift_p = jnp.pad(shift, ((0, 0), (0, d_in_pad - d_in)))
    wq_p = jnp.pad(wq, ((0, d_in_pad - d_in), (0, h_pad - hid))).astype(mxu_dtype)
    wk_p = jnp.pad(wk, ((0, d_in_pad - d_in), (0, h_pad - hid))).astype(mxu_dtype)
    wv_p = jnp.pad(wv, ((0, d_in_pad - d_in), (0, o_pad - d_out))).astype(mxu_dtype)
    bq_p = jnp.pad(bq, ((0, 0), (0, h_pad - hid)))                       # f32
    we_p = jnp.pad(we, ((0, 0), (0, h_pad - hid))).astype(ew_dtype)

    # ---- Stage 1: tiled BN + projections (hoisted out of the O(N^2) loop). ----
    rt = 128                               # n_pad is always a multiple of 128
    q, k, v = pl.pallas_call(
        functools.partial(bn_proj_kernel, mxu_dtype=mxu_dtype),
        grid=(n_pad // rt,),
        in_specs=[
            pl.BlockSpec((rt, d_in_pad), lambda i: (i, 0)),       # feat rows
            pl.BlockSpec((1, d_in_pad), lambda i: (0, 0)),        # BN scale
            pl.BlockSpec((1, d_in_pad), lambda i: (0, 0)),        # BN shift
            pl.BlockSpec((d_in_pad, h_pad), lambda i: (0, 0)),    # wq
            pl.BlockSpec((1, h_pad), lambda i: (0, 0)),           # bq
            pl.BlockSpec((d_in_pad, h_pad), lambda i: (0, 0)),    # wk
            pl.BlockSpec((d_in_pad, o_pad), lambda i: (0, 0)),    # wv
        ],
        out_specs=(
            pl.BlockSpec((rt, h_pad), lambda i: (i, 0)),
            pl.BlockSpec((rt, h_pad), lambda i: (i, 0)),
            pl.BlockSpec((rt, o_pad), lambda i: (i, 0)),
        ),
        out_shape=(
            jax.ShapeDtypeStruct((n_pad, h_pad), ew_dtype),       # q
            jax.ShapeDtypeStruct((n_pad, h_pad), ew_dtype),       # k
            jax.ShapeDtypeStruct((n_pad, o_pad), mxu_dtype),      # v
        ),
        compiler_params=pltpu.CompilerParams(
            dimension_semantics=("parallel",),
            vmem_limit_bytes=vmem_limit_bytes,
        ),
    )(feat_p, scale_p, shift_p, wq_p, bq_p, wk_p, wv_p)

    # ---- Adjacency as int8 [dst, src] + per-block edge counts (block skip). ----
    # TODO(synk): bit-pack the mask (32x smaller stream) for very large graphs.
    mask_i8 = (adj.T > 0).astype(jnp.int8)
    mask_i8 = jnp.pad(mask_i8, ((0, n_pad - n), (0, n_pad - n)))
    gj, gs = n_pad // tj, n_pad // ti
    counts = mask_i8.astype(jnp.int32).reshape(gj, tj, gs, ti).sum(axis=(1, 3))
    counts_flat = counts.reshape(-1)

    # ---- Stage 2: masked edge softmax + weighted aggregation. ----
    # TODO(synk): add pipeline_mode=pl.Buffered(3) on q/v/mask if DMAs become
    # exposed after the bf16 compute shrink (not needed for dense graphs).
    out = pl.pallas_call(
        functools.partial(sgat_attn_kernel, ew_dtype=ew_dtype,
                          mxu_dtype=mxu_dtype),
        grid_spec=pltpu.PrefetchScalarGridSpec(
            num_scalar_prefetch=1,
            grid=(gj, gs),
            in_specs=[
                pl.BlockSpec((tj, h_pad), lambda j, s, cnt: (j, 0)),   # k  (dst)
                pl.BlockSpec((ti, h_pad), lambda j, s, cnt: (s, 0)),   # q  (src)
                pl.BlockSpec((ti, o_pad), lambda j, s, cnt: (s, 0)),   # v  (src)
                pl.BlockSpec((tj, ti), lambda j, s, cnt: (j, s)),      # int8 mask
                pl.BlockSpec((1, h_pad), lambda j, s, cnt: (0, 0)),    # w_e
            ],
            out_specs=pl.BlockSpec((tj, o_pad), lambda j, s, cnt: (j, 0)),
            scratch_shapes=[
                pltpu.VMEM((tj, 1), jnp.float32),      # running max
                pltpu.VMEM((tj, 1), jnp.float32),      # running denominator
                pltpu.VMEM((tj, o_pad), jnp.float32),  # running numerator
            ],
        ),
        out_shape=jax.ShapeDtypeStruct((n_pad, o_pad), jnp.float32),
        compiler_params=pltpu.CompilerParams(
            dimension_semantics=("parallel", "arbitrary"),
            vmem_limit_bytes=vmem_limit_bytes,
        ),
    )(counts_flat, k, q, v, mask_i8, we_p)

    return out[:n, :d_out]


# ---------------------------------------------------------------------------
# Pure-JAX reference (same semantics as the PyTorch module forward).
# ---------------------------------------------------------------------------
def sgat_reference(feat, adj, gamma, beta, wq, bq, wk, wv, we):
    mean = jnp.mean(feat, axis=0, keepdims=True)
    var = jnp.mean((feat - mean) ** 2, axis=0, keepdims=True)
    feat_n = (feat - mean) / jnp.sqrt(var + EPS) * gamma + beta
    q = feat_n @ wq + bq
    k = feat_n @ wk
    v = feat_n @ wv
    e3 = jax.nn.sigmoid(q[:, None, :] + k[None, :, :])     # [src, dst, H]
    e = jnp.sum(e3 * we[None, :, :], axis=-1)               # [src, dst]
    e_masked = jnp.where(adj > 0, e, NEG_BIG)
    m = jnp.max(e_masked, axis=0, keepdims=True)
    p = jnp.where(adj > 0, jnp.exp(e_masked - m), 0.0)
    a = p / jnp.sum(p, axis=0, keepdims=True)
    return a.T @ v


if __name__ == "__main__":
    def build_inputs(n, d_in, hid, d_out, seed):
        key = jax.random.PRNGKey(seed)
        ks = jax.random.split(key, 9)
        feat = jax.random.normal(ks[0], (n, d_in), dtype=jnp.float32)
        adj = jax.random.bernoulli(ks[1], 0.25, (n, n)).astype(jnp.float32)
        adj = jnp.maximum(adj, jnp.eye(n, dtype=jnp.float32))  # self-loops
        gamma = 1.0 + 0.1 * jax.random.normal(ks[2], (1, d_in), dtype=jnp.float32)
        beta = 0.1 * jax.random.normal(ks[3], (1, d_in), dtype=jnp.float32)
        wq = 0.1 * jax.random.normal(ks[4], (d_in, hid), dtype=jnp.float32)
        bq = 0.1 * jax.random.normal(ks[5], (1, hid), dtype=jnp.float32)
        wk = 0.1 * jax.random.normal(ks[6], (d_in, hid), dtype=jnp.float32)
        wv = 0.1 * jax.random.normal(ks[7], (d_in, d_out), dtype=jnp.float32)
        we = 0.1 * jax.random.normal(ks[8], (1, hid), dtype=jnp.float32)
        return feat, adj, gamma, beta, wq, bq, wk, wv, we

    # Case 1: lane-aligned shapes -- strict f32 path vs reference.
    args = build_inputs(256, 128, 128, 128, seed=0)
    ref = sgat_reference(*args)

    out = jax.block_until_ready(
        sgat_forward(*args, ew_dtype=jnp.float32, mxu_dtype=jnp.float32))
    assert out.shape == ref.shape
    assert jnp.allclose(out, ref, atol=1e-4, rtol=1e-3), "f32 mismatch vs reference"

    # Device-default fast path (bf16 elementwise on v6e/v7x, f32 on v5e).
    out_fast = jax.block_until_ready(sgat_forward(*args))
    assert jnp.allclose(out_fast, ref, atol=1e-1, rtol=1e-1), \
        "fast-path mismatch vs reference"

    # Case 2: unaligned shapes exercise the padding path (strict f32).
    args2 = build_inputs(96, 64, 72, 40, seed=1)
    ref2 = sgat_reference(*args2)
    out2 = jax.block_until_ready(
        sgat_forward(*args2, ew_dtype=jnp.float32, mxu_dtype=jnp.float32))
    assert out2.shape == ref2.shape
    assert jnp.allclose(out2, ref2, atol=1e-4, rtol=1e-3), \
        "padded-case mismatch vs reference"

    print("KERNEL_OK")
</pallas_src>

<mosaic_0001>
module attributes {stable_mosaic.version = 11 : i64} {
  func.func @bn_proj_kernel(%arg0: i32, %arg1: memref<128x128xf32, #tpu.memory_space<vmem>>, %arg2: memref<1x128xf32, #tpu.memory_space<vmem>>, %arg3: memref<1x128xf32, #tpu.memory_space<vmem>>, %arg4: memref<128x128xf32, #tpu.memory_space<vmem>>, %arg5: memref<1x128xf32, #tpu.memory_space<vmem>>, %arg6: memref<128x128xf32, #tpu.memory_space<vmem>>, %arg7: memref<128x128xf32, #tpu.memory_space<vmem>>, %arg8: memref<128x128xf32, #tpu.memory_space<vmem>>, %arg9: memref<128x128xf32, #tpu.memory_space<vmem>>, %arg10: memref<128x128xf32, #tpu.memory_space<vmem>>) attributes {dimension_semantics = [#tpu.dimension_semantics<parallel>], iteration_bounds = array<i64: 2>, scalar_prefetch = 0 : i64, scratch_operands = 0 : i64, tpu.core_type = #tpu.core_type<tc>, window_params = [{transform_indices = @transform_0, window_bounds = array<i64: 128, 128>}, {pipeline_mode = #tpu.pipeline_mode<synchronous>, transform_indices = @transform_1, window_bounds = array<i64: 1, 128>}, {pipeline_mode = #tpu.pipeline_mode<synchronous>, transform_indices = @transform_2, window_bounds = array<i64: 1, 128>}, {pipeline_mode = #tpu.pipeline_mode<synchronous>, transform_indices = @transform_3, window_bounds = array<i64: 128, 128>}, {pipeline_mode = #tpu.pipeline_mode<synchronous>, transform_indices = @transform_4, window_bounds = array<i64: 1, 128>}, {pipeline_mode = #tpu.pipeline_mode<synchronous>, transform_indices = @transform_5, window_bounds = array<i64: 128, 128>}, {pipeline_mode = #tpu.pipeline_mode<synchronous>, transform_indices = @transform_6, window_bounds = array<i64: 128, 128>}, {transform_indices = @transform_7, window_bounds = array<i64: 128, 128>}, {transform_indices = @transform_8, window_bounds = array<i64: 128, 128>}, {transform_indices = @transform_9, window_bounds = array<i64: 128, 128>}]} {
    %c0 = arith.constant 0 : index
    %c0_0 = arith.constant 0 : index
    %0 = vector.load %arg1[%c0, %c0_0] : memref<128x128xf32, #tpu.memory_space<vmem>>, vector<128x128xf32>
    %c0_1 = arith.constant 0 : index
    %c0_2 = arith.constant 0 : index
    %1 = vector.load %arg2[%c0_1, %c0_2] : memref<1x128xf32, #tpu.memory_space<vmem>>, vector<1x128xf32>
    %2 = vector.broadcast %1 : vector<1x128xf32> to vector<128x128xf32>
    %3 = arith.mulf %0, %2 : vector<128x128xf32>
    %c0_3 = arith.constant 0 : index
    %c0_4 = arith.constant 0 : index
    %4 = vector.load %arg3[%c0_3, %c0_4] : memref<1x128xf32, #tpu.memory_space<vmem>>, vector<1x128xf32>
    %5 = vector.broadcast %4 : vector<1x128xf32> to vector<128x128xf32>
    %6 = arith.addf %3, %5 : vector<128x128xf32>
    %c0_5 = arith.constant 0 : index
    %c0_6 = arith.constant 0 : index
    %7 = vector.load %arg4[%c0_5, %c0_6] : memref<128x128xf32, #tpu.memory_space<vmem>>, vector<128x128xf32>
    %cst = arith.constant dense<0.000000e+00> : vector<128x128xf32>
    %8 = tpu.matmul %6, %7, %cst {dimension_numbers = #tpu.dot_dimension_numbers<[1], [0], [0], [1], [0, 0, 1, 1], [], []>} : vector<128x128xf32>, vector<128x128xf32>, vector<128x128xf32> -> vector<128x128xf32>
    %c0_7 = arith.constant 0 : index
    %c0_8 = arith.constant 0 : index
    %9 = vector.load %arg5[%c0_7, %c0_8] : memref<1x128xf32, #tpu.memory_space<vmem>>, vector<1x128xf32>
    %10 = vector.broadcast %9 : vector<1x128xf32> to vector<128x128xf32>
    %11 = arith.addf %8, %10 : vector<128x128xf32>
    %c0_9 = arith.constant 0 : index
    %c0_10 = arith.constant 0 : index
    %12 = vector.load %arg8[%c0_9, %c0_10] : memref<128x128xf32, #tpu.memory_space<vmem>>, vector<128x128xf32>
    tpu.vector_store %arg8[%c0_9, %c0_10], %11 {strides = array<i32>} : memref<128x128xf32, #tpu.memory_space<vmem>>, vector<128x128xf32>,
    %c0_11 = arith.constant 0 : index
    %c0_12 = arith.constant 0 : index
    %13 = vector.load %arg6[%c0_11, %c0_12] : memref<128x128xf32, #tpu.memory_space<vmem>>, vector<128x128xf32>
    %cst_13 = arith.constant dense<0.000000e+00> : vector<128x128xf32>
    %14 = tpu.matmul %6, %13, %cst_13 {dimension_numbers = #tpu.dot_dimension_numbers<[1], [0], [0], [1], [0, 0, 1, 1], [], []>} : vector<128x128xf32>, vector<128x128xf32>, vector<128x128xf32> -> vector<128x128xf32>
    %c0_14 = arith.constant 0 : index
    %c0_15 = arith.constant 0 : index
    %15 = vector.load %arg9[%c0_14, %c0_15] : memref<128x128xf32, #tpu.memory_space<vmem>>, vector<128x128xf32>
    tpu.vector_store %arg9[%c0_14, %c0_15], %14 {strides = array<i32>} : memref<128x128xf32, #tpu.memory_space<vmem>>, vector<128x128xf32>,
    %c0_16 = arith.constant 0 : index
    %c0_17 = arith.constant 0 : index
    %16 = vector.load %arg7[%c0_16, %c0_17] : memref<128x128xf32, #tpu.memory_space<vmem>>, vector<128x128xf32>
    %cst_18 = arith.constant dense<0.000000e+00> : vector<128x128xf32>
    %17 = tpu.matmul %6, %16, %cst_18 {dimension_numbers = #tpu.dot_dimension_numbers<[1], [0], [0], [1], [0, 0, 1, 1], [], []>} : vector<128x128xf32>, vector<128x128xf32>, vector<128x128xf32> -> vector<128x128xf32>
    %c0_19 = arith.constant 0 : index
    %c0_20 = arith.constant 0 : index
    %18 = vector.load %arg10[%c0_19, %c0_20] : memref<128x128xf32, #tpu.memory_space<vmem>>, vector<128x128xf32>
    tpu.vector_store %arg10[%c0_19, %c0_20], %17 {strides = array<i32>} : memref<128x128xf32, #tpu.memory_space<vmem>>, vector<128x128xf32>,
    return
  }
  func.func @transform_0(%arg0: i32) -> (i32, i32) {
    %c0_i32 = arith.constant 0 : i32
    %c0_i32_0 = arith.constant 0 : i32
    return %arg0, %c0_i32 : i32, i32
  }
  func.func @transform_1(%arg0: i32) -> (i32, i32) {
    %c0_i32 = arith.constant 0 : i32
    %c0_i32_0 = arith.constant 0 : i32
    %c0_i32_1 = arith.constant 0 : i32
    return %c0_i32, %c0_i32_0 : i32, i32
  }
  func.func @transform_2(%arg0: i32) -> (i32, i32) {
    %c0_i32 = arith.constant 0 : i32
    %c0_i32_0 = arith.constant 0 : i32
    %c0_i32_1 = arith.constant 0 : i32
    return %c0_i32, %c0_i32_0 : i32, i32
  }
  func.func @transform_3(%arg0: i32) -> (i32, i32) {
    %c0_i32 = arith.constant 0 : i32
    %c0_i32_0 = arith.constant 0 : i32
    %c0_i32_1 = arith.constant 0 : i32
    return %c0_i32, %c0_i32_0 : i32, i32
  }
  func.func @transform_4(%arg0: i32) -> (i32, i32) {
    %c0_i32 = arith.constant 0 : i32
    %c0_i32_0 = arith.constant 0 : i32
    %c0_i32_1 = arith.constant 0 : i32
    return %c0_i32, %c0_i32_0 : i32, i32
  }
  func.func @transform_5(%arg0: i32) -> (i32, i32) {
    %c0_i32 = arith.constant 0 : i32
    %c0_i32_0 = arith.constant 0 : i32
    %c0_i32_1 = arith.constant 0 : i32
    return %c0_i32, %c0_i32_0 : i32, i32
  }
  func.func @transform_6(%arg0: i32) -> (i32, i32) {
    %c0_i32 = arith.constant 0 : i32
    %c0_i32_0 = arith.constant 0 : i32
    %c0_i32_1 = arith.constant 0 : i32
    return %c0_i32, %c0_i32_0 : i32, i32
  }
  func.func @transform_7(%arg0: i32) -> (i32, i32) {
    %c0_i32 = arith.constant 0 : i32
    %c0_i32_0 = arith.constant 0 : i32
    return %arg0, %c0_i32 : i32, i32
  }
  func.func @transform_8(%arg0: i32) -> (i32, i32) {
    %c0_i32 = arith.constant 0 : i32
    %c0_i32_0 = arith.constant 0 : i32
    return %arg0, %c0_i32 : i32, i32
  }
  func.func @transform_9(%arg0: i32) -> (i32, i32) {
    %c0_i32 = arith.constant 0 : i32
    %c0_i32_0 = arith.constant 0 : i32
    return %arg0, %c0_i32 : i32, i32
  }
}

</mosaic_0001>

<llo_original>
// kernel: tpu_custom_call.1
$region0: #{tpu_custom_call.1}
  #allocation0 [shape = 'u32[]', space=smem, size = 0x4, offset = 0x4, fixed_abs, tag = 'smem constant byte address 0x4 - core index']
  #allocation1 [shape = 'u32[144,128]{1,0:T(1,128)}', space=vmem, size = 0x12000, scoped, tag = 'internal scratch']
  %s0 = inlined_call_operand.hbm [shape: f32[256,128], index: 0, kind: input, shape index: {}]
  %s1 = inlined_call_operand.hbm [shape: f32[1,128], index: 1, kind: input, shape index: {}]
  %s2 = inlined_call_operand.hbm [shape: f32[1,128], index: 2, kind: input, shape index: {}]
  %s3 = inlined_call_operand.hbm [shape: f32[128,128], index: 3, kind: input, shape index: {}]
  %s4 = inlined_call_operand.hbm [shape: f32[1,128], index: 4, kind: input, shape index: {}]
  %s5 = inlined_call_operand.hbm [shape: f32[128,128], index: 5, kind: input, shape index: {}]
  %s6 = inlined_call_operand.hbm [shape: f32[128,128], index: 6, kind: input, shape index: {}]
  %s7 = inlined_call_operand.hbm [shape: f32[256,128], index: 7, kind: output, shape index: {0}]
  %s8 = inlined_call_operand.hbm [shape: f32[256,128], index: 8, kind: output, shape index: {1}]
  %s9 = inlined_call_operand.hbm [shape: f32[256,128], index: 9, kind: output, shape index: {2}]
  %10 = xla_tuple %s7, %s8, %s9
  %s11 = sld [smem:[#allocation0]]
  $region105: #{tpu_custom_call.1} parent=0
    _
  %s13 = ssub.s32 1, %s11
  %s14 = scalar_select 0, %s13, %s11
  $region1: #{tpu_custom_call.1} parent=0
    #allocation2 [shape = 'u8[131072]{0}', space=vmem, size = 0x20000, scoped, tag = 'input window, operand 0']
    #allocation3 [shape = 's32[2]{0}', space=sflag, size = 0x8, scoped, tag = 'scoped memory for tpu_custom_call.1']
    #allocation4 [shape = 's32[2]{0}', space=sflag, size = 0x8, scoped, tag = 'scoped memory for tpu_custom_call.1']
    #allocation5 [shape = 'u8[512]{0}', space=vmem, size = 0x400, scoped, tag = 'input window, operand 1, single buffered']
    #allocation6 [shape = 's32[1]{0}', space=sflag, size = 0x4, scoped, tag = 'scoped memory for tpu_custom_call.1']
    #allocation7 [shape = 'u8[512]{0}', space=vmem, size = 0x400, scoped, tag = 'input window, operand 2, single buffered']
    #allocation8 [shape = 'u8[65536]{0}', space=vmem, size = 0x10000, scoped, tag = 'input window, operand 3, single buffered']
    #allocation9 [shape = 's32[1]{0}', space=sflag, size = 0x4, scoped, tag = 'scoped memory for tpu_custom_call.1']
    #allocation10 [shape = 'u8[512]{0}', space=vmem, size = 0x400, scoped, tag = 'input window, operand 4, single buffered']
    #allocation11 [shape = 'u8[65536]{0}', space=vmem, size = 0x10000, scoped, tag = 'input window, operand 5, single buffered']
    #allocation12 [shape = 's32[1]{0}', space=sflag, size = 0x4, scoped, tag = 'scoped memory for tpu_custom_call.1']
    #allocation13 [shape = 'u8[65536]{0}', space=vmem, size = 0x10000, scoped, tag = 'input window, operand 6, single buffered']
    #allocation14 [shape = 'u8[131072]{0}', space=vmem, size = 0x20000, scoped, tag = 'output window, operand 0']
    #allocation15 [shape = 'u8[131072]{0}', space=vmem, size = 0x20000, scoped, tag = 'output window, operand 1']
    #allocation16 [shape = 's32[2]{0}', space=sflag, size = 0x8, scoped, tag = 'scoped memory for tpu_custom_call.1']
    #allocation17 [shape = 'u8[131072]{0}', space=vmem, size = 0x20000, scoped, tag = 'output window, operand 2']
    %15 = vsyncpa [#allocation3], 0
    %s16 = scalar_lea.sflag [#allocation3], 1
    %17 = vsyncpa %s16, 0
    %18 = vsyncpa [#allocation6], 0
    %19 = vsyncpa [#allocation9], 0
    %20 = vsyncpa [#allocation12], 0
    %21 = vsyncpa [#allocation4], 0
    %s22 = scalar_lea.sflag [#allocation4], 1
    %23 = vsyncpa %s22, 0
    %24 = vsyncpa [#allocation16], 0
    %s25 = scalar_lea.sflag [#allocation16], 1
    %26 = vsyncpa %s25, 0
    loop: start=0, step=1, limit=4
    $region2: #{tpu_custom_call.1} parent=1 // loop_pre_header
      _
    $region3: #{tpu_custom_call.1} parent=1 // loop_header
      %s28 = sphi 0, %s32
      %p29 = scmp.ge.s32.totalorder %s28, 4
      %s38 = sphi 0, %s40
      %s41 = sphi 0, %s38
      %s42 = sphi 0, %s41
      %s58 = sphi 0, %s42
      %s62 = sphi 0, %s62
      %s64 = sphi 0, %s62
      %s65 = sphi 0, %s64
      %s79 = sphi 0, %s65
      %s83 = sphi 0, %s83
      %s85 = sphi 0, %s83
      %s86 = sphi 0, %s85
      %s100 = sphi 0, %s86
      %s104 = sphi 0, %s104
      %s106 = sphi 0, %s104
      %s107 = sphi 0, %s106
      %s121 = sphi 0, %s107
      %s125 = sphi 0, %s125
      %s127 = sphi 0, %s125
      %s128 = sphi 0, %s127
      %s142 = sphi 0, %s128
      %s146 = sphi 0, %s146
      %s148 = sphi 0, %s146
      %s149 = sphi 0, %s148
      %s163 = sphi 0, %s149
      %s167 = sphi 0, %s167
      %s169 = sphi 0, %s167
      %s170 = sphi 0, %s169
      %s184 = sphi 0, %s170
      %s190 = sphi 0, %s192
      %s193 = sphi 0, %s190
      %s194 = sphi 0, %s193
      %s210 = sphi 0, %s194
      %s216 = sphi 0, %s218
      %s219 = sphi 0, %s216
      %s220 = sphi 0, %s219
      %s236 = sphi 0, %s220
      %s242 = sphi 0, %s244
      %s245 = sphi 0, %s242
      %s246 = sphi 0, %s245
      %s262 = sphi 0, %s246
    $region4: #{tpu_custom_call.1} parent=1 // loop_header_branch
      %31 = sbr.rel (%p29) target = $region8
    $region5: #{tpu_custom_call.1} parent=1 // loop_body
      %s33 = ssub.s32 %s28, 1
      %s34 = ssub.s32 %s28, 2
      %s35 = sadd.s32 %s28, 1
      %s36 = ssub.s32 %s28, %s35
      %p37 = scmp.eq.s32.totalorder %s36, 0
      %s39 = sadd.s32 %s38, 1
      %s40 = scalar_select %p37, %s38, %s39
      %p43 = pneg %p37
      %p44 = scmp.eq.s32.totalorder %s28, 1
      %p45 = por %p43, %p44
      %p46 = scmp.ne.s32.totalorder %s38, %s41
      %p47 = scmp.eq.s32.totalorder %s28, 0
      %p48 = por %p46, %p47
      %p49 = scmp.ne.s32.totalorder %s38, %s41
      %p50 = scmp.eq.s32.totalorder %s33, 1
      %p51 = por %p49, %p50
      %p52 = scmp.ne.s32.totalorder %s41, %s42
      %p53 = scmp.eq.s32.totalorder %s33, 0
      %p54 = por %p52, %p53
      %p55 = scmp.ne.s32.totalorder %s41, %s42
      %p56 = scmp.eq.s32.totalorder %s34, 1
      %p57 = por %p55, %p56
      %p59 = scmp.ne.s32.totalorder %s42, %s58
      %p60 = scmp.eq.s32.totalorder %s34, 0
      %p61 = por %p59, %p60
      %s63 = sadd.s32 %s62, 1
      %p66 = scmp.eq.s32.totalorder %s28, 1
      %p67 = scmp.ne.s32.totalorder %s62, %s64
      %p68 = scmp.eq.s32.totalorder %s28, 0
      %p69 = por %p67, %p68
      %p70 = scmp.ne.s32.totalorder %s62, %s64
      %p71 = scmp.eq.s32.totalorder %s33, 1
      %p72 = por %p70, %p71
      %p73 = scmp.ne.s32.totalorder %s64, %s65
      %p74 = scmp.eq.s32.totalorder %s33, 0
      %p75 = por %p73, %p74
      %p76 = scmp.ne.s32.totalorder %s64, %s65
      %p77 = scmp.eq.s32.totalorder %s34, 1
      %p78 = por %p76, %p77
      %p80 = scmp.ne.s32.totalorder %s65, %s79
      %p81 = scmp.eq.s32.totalorder %s34, 0
      %p82 = por %p80, %p81
      %s84 = sadd.s32 %s83, 1
      %p87 = scmp.eq.s32.totalorder %s28, 1
      %p88 = scmp.ne.s32.totalorder %s83, %s85
      %p89 = scmp.eq.s32.totalorder %s28, 0
      %p90 = por %p88, %p89
      %p91 = scmp.ne.s32.totalorder %s83, %s85
      %p92 = scmp.eq.s32.totalorder %s33, 1
      %p93 = por %p91, %p92
      %p94 = scmp.ne.s32.totalorder %s85, %s86
      %p95 = scmp.eq.s32.totalorder %s33, 0
      %p96 = por %p94, %p95
      %p97 = scmp.ne.s32.totalorder %s85, %s86
      %p98 = scmp.eq.s32.totalorder %s34, 1
      %p99 = por %p97, %p98
      %p101 = scmp.ne.s32.totalorder %s86, %s100
      %p102 = scmp.eq.s32.totalorder %s34, 0
      %p103 = por %p101, %p102
      %s105 = sadd.s32 %s104, 1
      %p108 = scmp.eq.s32.totalorder %s28, 1
      %p109 = scmp.ne.s32.totalorder %s104, %s106
      %p110 = scmp.eq.s32.totalorder %s28, 0
      %p111 = por %p109, %p110
      %p112 = scmp.ne.s32.totalorder %s104, %s106
      %p113 = scmp.eq.s32.totalorder %s33, 1
      %p114 = por %p112, %p113
      %p115 = scmp.ne.s32.totalorder %s106, %s107
      %p116 = scmp.eq.s32.totalorder %s33, 0
      %p117 = por %p115, %p116
      %p118 = scmp.ne.s32.totalorder %s106, %s107
      %p119 = scmp.eq.s32.totalorder %s34, 1
      %p120 = por %p118, %p119
      %p122 = scmp.ne.s32.totalorder %s107, %s121
      %p123 = scmp.eq.s32.totalorder %s34, 0
      %p124 = por %p122, %p123
      %s126 = sadd.s32 %s125, 1
      %p129 = scmp.eq.s32.totalorder %s28, 1
      %p130 = scmp.ne.s32.totalorder %s125, %s127
      %p131 = scmp.eq.s32.totalorder %s28, 0
      %p132 = por %p130, %p131
      %p133 = scmp.ne.s32.totalorder %s125, %s127
      %p134 = scmp.eq.s32.totalorder %s33, 1
      %p135 = por %p133, %p134
      %p136 = scmp.ne.s32.totalorder %s127, %s128
      %p137 = scmp.eq.s32.totalorder %s33, 0
      %p138 = por %p136, %p137
      %p139 = scmp.ne.s32.totalorder %s127, %s128
      %p140 = scmp.eq.s32.totalorder %s34, 1
      %p141 = por %p139, %p140
      %p143 = scmp.ne.s32.totalorder %s128, %s142
      %p144 = scmp.eq.s32.totalorder %s34, 0
      %p145 = por %p143, %p144
      %s147 = sadd.s32 %s146, 1
      %p150 = scmp.eq.s32.totalorder %s28, 1
      %p151 = scmp.ne.s32.totalorder %s146, %s148
      %p152 = scmp.eq.s32.totalorder %s28, 0
      %p153 = por %p151, %p152
      %p154 = scmp.ne.s32.totalorder %s146, %s148
      %p155 = scmp.eq.s32.totalorder %s33, 1
      %p156 = por %p154, %p155
      %p157 = scmp.ne.s32.totalorder %s148, %s149
      %p158 = scmp.eq.s32.totalorder %s33, 0
      %p159 = por %p157, %p158
      %p160 = scmp.ne.s32.totalorder %s148, %s149
      %p161 = scmp.eq.s32.totalorder %s34, 1
      %p162 = por %p160, %p161
      %p164 = scmp.ne.s32.totalorder %s149, %s163
      %p165 = scmp.eq.s32.totalorder %s34, 0
      %p166 = por %p164, %p165
      %s168 = sadd.s32 %s167, 1
      %p171 = scmp.eq.s32.totalorder %s28, 1
      %p172 = scmp.ne.s32.totalorder %s167, %s169
      %p173 = scmp.eq.s32.totalorder %s28, 0
      %p174 = por %p172, %p173
      %p175 = scmp.ne.s32.totalorder %s167, %s169
      %p176 = scmp.eq.s32.totalorder %s33, 1
      %p177 = por %p175, %p176
      %p178 = scmp.ne.s32.totalorder %s169, %s170
      %p179 = scmp.eq.s32.totalorder %s33, 0
      %p180 = por %p178, %p179
      %p181 = scmp.ne.s32.totalorder %s169, %s170
      %p182 = scmp.eq.s32.totalorder %s34, 1
      %p183 = por %p181, %p182
      %p185 = scmp.ne.s32.totalorder %s170, %s184
      %p186 = scmp.eq.s32.totalorder %s34, 0
      %p187 = por %p185, %p186
      %s188 = ssub.s32 %s28, %s35
      %p189 = scmp.eq.s32.totalorder %s188, 0
      %s191 = sadd.s32 %s190, 1
      %s192 = scalar_select %p189, %s190, %s191
      %p195 = pneg %p189
      %p196 = scmp.eq.s32.totalorder %s28, 1
      %p197 = por %p195, %p196
      %p198 = scmp.ne.s32.totalorder %s190, %s193
      %p199 = scmp.eq.s32.totalorder %s28, 0
      %p200 = por %p198, %p199
      %p201 = scmp.ne.s32.totalorder %s190, %s193
      %p202 = scmp.eq.s32.totalorder %s33, 1
      %p203 = por %p201, %p202
      %p204 = scmp.ne.s32.totalorder %s193, %s194
      %p205 = scmp.eq.s32.totalorder %s33, 0
      %p206 = por %p204, %p205
      %p207 = scmp.ne.s32.totalorder %s193, %s194
      %p208 = scmp.eq.s32.totalorder %s34, 1
      %p209 = por %p207, %p208
      %p211 = scmp.ne.s32.totalorder %s194, %s210
      %p212 = scmp.eq.s32.totalorder %s34, 0
      %p213 = por %p211, %p212
      %s214 = ssub.s32 %s28, %s35
      %p215 = scmp.eq.s32.totalorder %s214, 0
      %s217 = sadd.s32 %s216, 1
      %s218 = scalar_select %p215, %s216, %s217
      %p221 = pneg %p215
      %p222 = scmp.eq.s32.totalorder %s28, 1
      %p223 = por %p221, %p222
      %p224 = scmp.ne.s32.totalorder %s216, %s219
      %p225 = scmp.eq.s32.totalorder %s28, 0
      %p226 = por %p224, %p225
      %p227 = scmp.ne.s32.totalorder %s216, %s219
      %p228 = scmp.eq.s32.totalorder %s33, 1
      %p229 = por %p227, %p228
      %p230 = scmp.ne.s32.totalorder %s219, %s220
      %p231 = scmp.eq.s32.totalorder %s33, 0
      %p232 = por %p230, %p231
      %p233 = scmp.ne.s32.totalorder %s219, %s220
      %p234 = scmp.eq.s32.totalorder %s34, 1
      %p235 = por %p233, %p234
      %p237 = scmp.ne.s32.totalorder %s220, %s236
      %p238 = scmp.eq.s32.totalorder %s34, 0
      %p239 = por %p237, %p238
      %s240 = ssub.s32 %s28, %s35
      %p241 = scmp.eq.s32.totalorder %s240, 0
      %s243 = sadd.s32 %s242, 1
      %s244 = scalar_select %p241, %s242, %s243
      %p247 = pneg %p241
      %p248 = scmp.eq.s32.totalorder %s28, 1
      %p249 = por %p247, %p248
      %p250 = scmp.ne.s32.totalorder %s242, %s245
      %p251 = scmp.eq.s32.totalorder %s28, 0
      %p252 = por %p250, %p251
      %p253 = scmp.ne.s32.totalorder %s242, %s245
      %p254 = scmp.eq.s32.totalorder %s33, 1
      %p255 = por %p253, %p254
      %p256 = scmp.ne.s32.totalorder %s245, %s246
      %p257 = scmp.eq.s32.totalorder %s33, 0
      %p258 = por %p256, %p257
      %p259 = scmp.ne.s32.totalorder %s245, %s246
      %p260 = scmp.eq.s32.totalorder %s34, 1
      %p261 = por %p259, %p260
      %p263 = scmp.ne.s32.totalorder %s246, %s262
      %p264 = scmp.eq.s32.totalorder %s34, 0
      %p265 = por %p263, %p264
      %p266 = scmp.le.s32.totalorder 1, %s28
      %p267 = scmp.lt.s32.totalorder %s28, 3
      %p268 = pnand %p266, %p267
      %p269 = pneg %p268
      // Predicated region
      $region9: #{tpu_custom_call.1} parent=5 // pred_check
        _
      $region10: #{tpu_custom_call.1} parent=5 // pred_check_branch
        %271 = sbr.rel (%p268) target = $region12
      $region11: #{tpu_custom_call.1} parent=5 // pred_region
        %s272 = ssub.s32 %s28, 1
        // Predicated region
        $region13: #{tpu_custom_call.1} parent=11 // pred_check
          %p273 = pneg %p75
        $region14: #{tpu_custom_call.1} parent=11 // pred_check_branch
          %275 = sbr.rel (%p273) target = $region16
        $region15: #{tpu_custom_call.1} parent=11 // pred_region
          %s277 = ssub.s32 16, 16
          %278 = vsyncadd [#allocation6], %s277
          %s280 = sshll.u32 [#allocation5], 4
          %s281 = int_to_ptr.vmem [resolvable:$true] %s280
          %283 = dma.hbm_to_vmem [thread:$0]  %s1, 16, %s281, [#allocation6]
        $region16: #{tpu_custom_call.1} parent=11 // pred_fallthru
          _
        // Predicated region
        $region17: #{tpu_custom_call.1} parent=11 // pred_check
          %p284 = pneg %p96
        $region18: #{tpu_custom_call.1} parent=11 // pred_check_branch
          %286 = sbr.rel (%p284) target = $region20
        $region19: #{tpu_custom_call.1} parent=11 // pred_region
          %s288 = ssub.s32 16, 16
          %289 = vsyncadd [#allocation6], %s288
          %s291 = sshll.u32 [#allocation7], 4
          %s292 = int_to_ptr.vmem [resolvable:$true] %s291
          %294 = dma.hbm_to_vmem [thread:$0]  %s2, 16, %s292, [#allocation6]
        $region20: #{tpu_custom_call.1} parent=11 // pred_fallthru
          _
        // Predicated region
        $region21: #{tpu_custom_call.1} parent=11 // pred_check
          %p295 = pneg %p117
        $region22: #{tpu_custom_call.1} parent=11 // pred_check_branch
          %297 = sbr.rel (%p295) target = $region24
        $region23: #{tpu_custom_call.1} parent=11 // pred_region
          %s299 = ssub.s32 2048, 2048
          %300 = vsyncadd [#allocation9], %s299
          %s301 = sshll.u32 [#allocation8], 4
          %s302 = int_to_ptr.vmem [resolvable:$true] %s301
          %307 = dma.hbm_to_vmem [thread:$0]  %s3, 2048, %s302, [#allocation9], 128, 128, 8
        $region24: #{tpu_custom_call.1} parent=11 // pred_fallthru
          _
        // Predicated region
        $region25: #{tpu_custom_call.1} parent=11 // pred_check
          %p308 = pneg %p138
        $region26: #{tpu_custom_call.1} parent=11 // pred_check_branch
          %310 = sbr.rel (%p308) target = $region28
        $region27: #{tpu_custom_call.1} parent=11 // pred_region
          %s312 = ssub.s32 16, 16
          %313 = vsyncadd [#allocation9], %s312
          %s315 = sshll.u32 [#allocation10], 4
          %s316 = int_to_ptr.vmem [resolvable:$true] %s315
          %318 = dma.hbm_to_vmem [thread:$0]  %s4, 16, %s316, [#allocation9]
        $region28: #{tpu_custom_call.1} parent=11 // pred_fallthru
          _
        // Predicated region
        $region29: #{tpu_custom_call.1} parent=11 // pred_check
          %p319 = pneg %p159
        $region30: #{tpu_custom_call.1} parent=11 // pred_check_branch
          %321 = sbr.rel (%p319) target = $region32
        $region31: #{tpu_custom_call.1} parent=11 // pred_region
          %s323 = ssub.s32 2048, 2048
          %324 = vsyncadd [#allocation12], %s323
          %s325 = sshll.u32 [#allocation11], 4
          %s326 = int_to_ptr.vmem [resolvable:$true] %s325
          %331 = dma.hbm_to_vmem [thread:$0]  %s5, 2048, %s326, [#allocation12], 128, 128, 8
        $region32: #{tpu_custom_call.1} parent=11 // pred_fallthru
          _
        // Predicated region
        $region33: #{tpu_custom_call.1} parent=11 // pred_check
          %p332 = pneg %p180
        $region34: #{tpu_custom_call.1} parent=11 // pred_check_branch
          %334 = sbr.rel (%p332) target = $region36
        $region35: #{tpu_custom_call.1} parent=11 // pred_region
          %s336 = ssub.s32 2048, 2048
          %337 = vsyncadd [#allocation12], %s336
          %s338 = sshll.u32 [#allocation13], 4
          %s339 = int_to_ptr.vmem [resolvable:$true] %s338
          %344 = dma.hbm_to_vmem [thread:$0]  %s6, 2048, %s339, [#allocation12], 128, 128, 8
        $region36: #{tpu_custom_call.1} parent=11 // pred_fallthru
          _
      $region12: #{tpu_custom_call.1} parent=5 // pred_fallthru
        _
      %p345 = scmp.lt.s32.totalorder %s28, 2
      // Predicated region
      $region37: #{tpu_custom_call.1} parent=5 // pred_check
        %p346 = pneg %p345
      $region38: #{tpu_custom_call.1} parent=5 // pred_check_branch
        %348 = sbr.rel (%p346) target = $region40
      $region39: #{tpu_custom_call.1} parent=5 // pred_region
        // Predicated region
        $region41: #{tpu_custom_call.1} parent=39 // pred_check
          %p349 = pneg %p48
        $region42: #{tpu_custom_call.1} parent=39 // pred_check_branch
          %351 = sbr.rel (%p349) target = $region44
        $region43: #{tpu_custom_call.1} parent=39 // pred_region
          %s352 = sand.u32 %s38, 1
          %s353 = scalar_lea.sflag [#allocation3], %s352
          %s354 = sand.u32 %s38, 1
          %s355 = smul.addr %s354, 128
          %s356 = scalar_lea.vmem [#allocation2], %s355
          %s357 = smul.u32 16, %s28
          %s359 = ssub.s32 2048, 2048
          %360 = vsyncadd %s353, %s359
          %s361 = smul.addr %s357, 128
          %s362 = scalar_lea.hbm %s0, %s361
          %s363 = sshll.u32 %s356, 4
          %s364 = int_to_ptr.vmem [resolvable:$true] %s363
          %369 = dma.hbm_to_vmem [thread:$0]  %s362, 2048, %s364, %s353, 128, 128, 8
        $region44: #{tpu_custom_call.1} parent=39 // pred_fallthru
          _
      $region40: #{tpu_custom_call.1} parent=5 // pred_fallthru
        _
      %p370 = scmp.le.s32.totalorder 1, %s28
      %p371 = scmp.lt.s32.totalorder %s28, 3
      %p372 = pnand %p370, %p371
      %p373 = pneg %p372
      // Predicated region
      $region45: #{tpu_custom_call.1} parent=5 // pred_check
        _
      $region46: #{tpu_custom_call.1} parent=5 // pred_check_branch
        %375 = sbr.rel (%p372) target = $region48
      $region47: #{tpu_custom_call.1} parent=5 // pred_region
        %s376 = ssub.s32 %s28, 1
        %s377 = sand.u32 %s41, 1
        %s378 = scalar_lea.sflag [#allocation3], %s377
        %s379 = sand.u32 %s41, 1
        %s380 = smul.addr %s379, 128
        %s381 = scalar_lea.vmem [#allocation2], %s380
        // Predicated region
        $region49: #{tpu_custom_call.1} parent=47 // pred_check
          %p382 = pneg %p54
        $region50: #{tpu_custom_call.1} parent=47 // pred_check_branch
          %384 = sbr.rel (%p382) target = $region52
        $region51: #{tpu_custom_call.1} parent=47 // pred_region
          %385 = dma.done %s378, 2048
        $region52: #{tpu_custom_call.1} parent=47 // pred_fallthru
          _
        // Predicated region
        $region53: #{tpu_custom_call.1} parent=47 // pred_check
          %p386 = pneg %p75
        $region54: #{tpu_custom_call.1} parent=47 // pred_check_branch
          %388 = sbr.rel (%p386) target = $region56
        $region55: #{tpu_custom_call.1} parent=47 // pred_region
          %389 = dma.done [#allocation6], 16
        $region56: #{tpu_custom_call.1} parent=47 // pred_fallthru
          _
        // Predicated region
        $region57: #{tpu_custom_call.1} parent=47 // pred_check
          %p390 = pneg %p96
        $region58: #{tpu_custom_call.1} parent=47 // pred_check_branch
          %392 = sbr.rel (%p390) target = $region60
        $region59: #{tpu_custom_call.1} parent=47 // pred_region
          %393 = dma.done [#allocation6], 16
        $region60: #{tpu_custom_call.1} parent=47 // pred_fallthru
          _
        // Predicated region
        $region61: #{tpu_custom_call.1} parent=47 // pred_check
          %p394 = pneg %p117
        $region62: #{tpu_custom_call.1} parent=47 // pred_check_branch
          %396 = sbr.rel (%p394) target = $region64
        $region63: #{tpu_custom_call.1} parent=47 // pred_region
          %397 = dma.done [#allocation9], 2048
        $region64: #{tpu_custom_call.1} parent=47 // pred_fallthru
          _
        // Predicated region
        $region65: #{tpu_custom_call.1} parent=47 // pred_check
          %p398 = pneg %p138
        $region66: #{tpu_custom_call.1} parent=47 // pred_check_branch
          %400 = sbr.rel (%p398) target = $region68
        $region67: #{tpu_custom_call.1} parent=47 // pred_region
          %401 = dma.done [#allocation9], 16
        $region68: #{tpu_custom_call.1} parent=47 // pred_fallthru
          _
        // Predicated region
        $region69: #{tpu_custom_call.1} parent=47 // pred_check
          %p402 = pneg %p159
        $region70: #{tpu_custom_call.1} parent=47 // pred_check_branch
          %404 = sbr.rel (%p402) target = $region72
        $region71: #{tpu_custom_call.1} parent=47 // pred_region
          %405 = dma.done [#allocation12], 2048
        $region72: #{tpu_custom_call.1} parent=47 // pred_fallthru
          _
        // Predicated region
        $region73: #{tpu_custom_call.1} parent=47 // pred_check
          %p406 = pneg %p180
        $region74: #{tpu_custom_call.1} parent=47 // pred_check_branch
          %408 = sbr.rel (%p406) target = $region76
        $region75: #{tpu_custom_call.1} parent=47 // pred_region
          %409 = dma.done [#allocation12], 2048
        $region76: #{tpu_custom_call.1} parent=47 // pred_fallthru
          _
        %s410 = sand.u32 %s41, 1
        %s411 = scalar_lea.sflag [#allocation3], %s410
        %s412 = sand.u32 %s41, 1
        %s413 = smul.addr %s412, 128
        %s414 = scalar_lea.vmem [#allocation2], %s413
        %p415 = pneg %p54
        %p416 = pneg %p51
        %p417 = pneg %p75
        %p418 = pneg %p72
        %p419 = pneg %p96
        %p420 = pneg %p93
        %p421 = pneg %p117
        %p422 = pneg %p114
        %p423 = pneg %p138
        %p424 = pneg %p135
        %p425 = pneg %p159
        %p426 = pneg %p156
        %p427 = pneg %p180
        %p428 = pneg %p177
        %p429 = pneg %p206
        %p430 = pneg %p203
        %s431 = sand.u32 %s193, 1
        %s432 = scalar_lea.sflag [#allocation4], %s431
        %s433 = sand.u32 %s193, 1
        %s434 = smul.addr %s433, 128
        %s435 = scalar_lea.vmem [#allocation14], %s434
        %p436 = pneg %p232
        %p437 = pneg %p229
        %s438 = sand.u32 %s33, 1
        %s439 = scalar_lea.sflag [#allocation16], %s438
        %s440 = sand.u32 %s219, 1
        %s441 = smul.addr %s440, 128
        %s442 = scalar_lea.vmem [#allocation15], %s441
        %p443 = pneg %p258
        %p444 = pneg %p255
        %s445 = sand.u32 %s33, 1
        %s446 = scalar_lea.sflag [#allocation16], %s445
        %s447 = sand.u32 %s245, 1
        %s448 = smul.addr %s447, 128
        %s449 = scalar_lea.vmem [#allocation17], %s448
        %s450 = smul.u32 16, %s33
        %s451 = smul.u32 16, %s33
        %s452 = smul.u32 16, %s33
        %s453 = smul.u32 16, %s33
        %v454 = vld [vmem:[%s381] sm:$0xff]
        %v455 = vld [vmem:[%s381 + $0x8] sm:$0xff]
        %v456 = vld [vmem:[%s381 + $0x10] sm:$0xff]
        %v457 = vld [vmem:[%s381 + $0x18] sm:$0xff]
        %v458 = vld [vmem:[%s381 + $0x20] sm:$0xff]
        %v459 = vld [vmem:[%s381 + $0x28] sm:$0xff]
        %v460 = vld [vmem:[%s381 + $0x30] sm:$0xff]
        %v461 = vld [vmem:[%s381 + $0x38] sm:$0xff]
        %v462 = vld [vmem:[%s381 + $0x40] sm:$0xff]
        %v463 = vld [vmem:[%s381 + $0x48] sm:$0xff]
        %v464 = vld [vmem:[%s381 + $0x50] sm:$0xff]
        %v465 = vld [vmem:[%s381 + $0x58] sm:$0xff]
        %v466 = vld [vmem:[%s381 + $0x60] sm:$0xff]
        %v467 = vld [vmem:[%s381 + $0x68] sm:$0xff]
        %v468 = vld [vmem:[%s381 + $0x70] sm:$0xff]
        %v469 = vld [vmem:[%s381 + $0x78] sm:$0xff]
        %v470 = vld [vmem:[#allocation5] sm:$0x1]
        %v472 = vlaneseq
        %v473 = vshrl.u32 %v472, 7
        %v474 = vsub.s32 0, %v473
        %v475 = vrot.slane %v470, %v474
        %v477 = vmul.f32 %v454, %v475
        %v478 = vmul.f32 %v455, %v475
        %v479 = vmul.f32 %v456, %v475
        %v480 = vmul.f32 %v457, %v475
        %v481 = vmul.f32 %v458, %v475
        %v482 = vmul.f32 %v459, %v475
        %v483 = vmul.f32 %v460, %v475
        %v484 = vmul.f32 %v461, %v475
        %v485 = vmul.f32 %v462, %v475
        %v486 = vmul.f32 %v463, %v475
        %v487 = vmul.f32 %v464, %v475
        %v488 = vmul.f32 %v465, %v475
        %v489 = vmul.f32 %v466, %v475
        %v490 = vmul.f32 %v467, %v475
        %v491 = vmul.f32 %v468, %v475
        %v492 = vmul.f32 %v469, %v475
        %v493 = vld [vmem:[#allocation7] sm:$0x1]
        %v495 = vlaneseq
        %v496 = vshrl.u32 %v495, 7
        %v497 = vsub.s32 0, %v496
        %v498 = vrot.slane %v493, %v497
        %v500 = vadd.f32 %v477, %v498
        %v501 = vadd.f32 %v478, %v498
        %v502 = vadd.f32 %v479, %v498
        %v503 = vadd.f32 %v480, %v498
        %v504 = vadd.f32 %v481, %v498
        %v505 = vadd.f32 %v482, %v498
        %v506 = vadd.f32 %v483, %v498
        %v507 = vadd.f32 %v484, %v498
        %v508 = vadd.f32 %v485, %v498
        %v509 = vadd.f32 %v486, %v498
        %v510 = vadd.f32 %v487, %v498
        %v511 = vadd.f32 %v488, %v498
        %v512 = vadd.f32 %v489, %v498
        %v513 = vadd.f32 %v490, %v498
        %v514 = vadd.f32 %v491, %v498
        %v515 = vadd.f32 %v492, %v498
        %v516 = vld [vmem:[#allocation8] sm:$0xff]
        %v517 = vld [vmem:[#allocation8 + $0x8] sm:$0xff]
        %v518 = vld [vmem:[#allocation8 + $0x10] sm:$0xff]
        %v519 = vld [vmem:[#allocation8 + $0x18] sm:$0xff]
        %v520 = vld [vmem:[#allocation8 + $0x20] sm:$0xff]
        %v521 = vld [vmem:[#allocation8 + $0x28] sm:$0xff]
        %v522 = vld [vmem:[#allocation8 + $0x30] sm:$0xff]
        %v523 = vld [vmem:[#allocation8 + $0x38] sm:$0xff]
        %v524 = vld [vmem:[#allocation8 + $0x40] sm:$0xff]
        %v525 = vld [vmem:[#allocation8 + $0x48] sm:$0xff]
        %v526 = vld [vmem:[#allocation8 + $0x50] sm:$0xff]
        %v527 = vld [vmem:[#allocation8 + $0x58] sm:$0xff]
        %v528 = vld [vmem:[#allocation8 + $0x60] sm:$0xff]
        %v529 = vld [vmem:[#allocation8 + $0x68] sm:$0xff]
        %v530 = vld [vmem:[#allocation8 + $0x70] sm:$0xff]
        %v531 = vld [vmem:[#allocation8 + $0x78] sm:$0xff]
        %v532 = vld [vmem:[#allocation10] sm:$0x1]
        %v534 = vlaneseq
        %v535 = vshrl.u32 %v534, 7
        %v536 = vsub.s32 0, %v535
        %v537 = vrot.slane %v532, %v536
        %539 = vmatprep.subr.mxu0 0.0
        %540 = vmatpush1.msra.mxu0 %v516
        %541 = vmatprep.subr.mxu0 0.0
        %542 = vmatpush1.msra.mxu0 %v517
        %543 = vmatprep.subr.mxu0 0.0
        %544 = vmatpush1.msra.mxu0 %v518
        %545 = vmatprep.subr.mxu0 0.0
        %546 = vmatpush1.msra.mxu0 %v519
        %547 = vmatprep.subr.mxu0 0.0
        %548 = vmatpush1.msra.mxu0 %v520
        %549 = vmatprep.subr.mxu0 0.0
        %550 = vmatpush1.msra.mxu0 %v521
        %551 = vmatprep.subr.mxu0 0.0
        %552 = vmatpush1.msra.mxu0 %v522
        %553 = vmatprep.subr.mxu0 0.0
        %554 = vmatpush1.msra.mxu0 %v523
        %555 = vmatprep.subr.mxu0 0.0
        %556 = vmatpush1.msra.mxu0 %v524
        %557 = vmatprep.subr.mxu0 0.0
        %558 = vmatpush1.msra.mxu0 %v525
        %559 = vmatprep.subr.mxu0 0.0
        %560 = vmatpush1.msra.mxu0 %v526
        %561 = vmatprep.subr.mxu0 0.0
        %562 = vmatpush1.msra.mxu0 %v527
        %563 = vmatprep.subr.mxu0 0.0
        %564 = vmatpush1.msra.mxu0 %v528
        %565 = vmatprep.subr.mxu0 0.0
        %566 = vmatpush1.msra.mxu0 %v529
        %567 = vmatprep.subr.mxu0 0.0
        %568 = vmatpush1.msra.mxu0 %v530
        %569 = vmatprep.subr.mxu0 0.0
        %570 = vmatpush1.msra.mxu0 %v531
        %571 = vmatprep.subr.mxu0 0.0
        %572 = vmatpush1.msra.mxu0 0.0
        %573 = vmatprep.subr.mxu0 0.0
        %574 = vmatpush1.msra.mxu0 0.0
        %575 = vmatprep.subr.mxu0 0.0
        %576 = vmatpush1.msra.mxu0 0.0
        %577 = vmatprep.subr.mxu0 0.0
        %578 = vmatpush1.msra.mxu0 0.0
        %579 = vmatprep.subr.mxu0 0.0
        %580 = vmatpush1.msra.mxu0 0.0
        %581 = vmatprep.subr.mxu0 0.0
        %582 = vmatpush1.msra.mxu0 0.0
        %583 = vmatprep.subr.mxu0 0.0
        %584 = vmatpush1.msra.mxu0 0.0
        %585 = vmatprep.subr.mxu0 0.0
        %586 = vmatpush1.msra.mxu0 0.0
        %587 = vmatprep.subr.mxu0 0.0
        %588 = vmatpush1.msra.mxu0 0.0
        %589 = vmatprep.subr.mxu0 0.0
        %590 = vmatpush1.msra.mxu0 0.0
        %591 = vmatprep.subr.mxu0 0.0
        %592 = vmatpush1.msra.mxu0 0.0
        %593 = vmatprep.subr.mxu0 0.0
        %594 = vmatpush1.msra.mxu0 0.0
        %595 = vmatprep.subr.mxu0 0.0
        %596 = vmatpush1.msra.mxu0 0.0
        %597 = vmatprep.subr.mxu0 0.0
        %598 = vmatpush1.msra.mxu0 0.0
        %599 = vmatprep.subr.mxu0 0.0
        %600 = vmatpush1.msra.mxu0 0.0
        %601 = vmatprep.subr.mxu0 0.0
        %602 = vmatpush1.msra.mxu0 0.0
        %603 = vmatprep.mubr.f32.mxu0 0.0
        %604 = vmatmul.mubr.f32.gmra.mrb[0].mxu0 %v500
        %v605 = vpop.f32.mrb[0].mxu0
        %v606 = vadd.f32 %v537, %v605
        %v607 = vpop.f32.mrb[0].mxu0
        %608 = vmatprep.mubr.f32.mxu0 0.0
        %609 = vmatmul.mubr.f32.gmra.mrb[0].mxu0 %v501
        %v610 = vpop.f32.mrb[0].mxu0
        %v611 = vadd.f32 %v537, %v610
        %v612 = vpop.f32.mrb[0].mxu0
        %613 = vmatprep.mubr.f32.mxu0 0.0
        %614 = vmatmul.mubr.f32.gmra.mrb[0].mxu0 %v502
        %v615 = vpop.f32.mrb[0].mxu0
        %v616 = vadd.f32 %v537, %v615
        %v617 = vpop.f32.mrb[0].mxu0
        %618 = vmatprep.mubr.f32.mxu0 0.0
        %619 = vmatmul.mubr.f32.gmra.mrb[0].mxu0 %v503
        %v620 = vpop.f32.mrb[0].mxu0
        %v621 = vadd.f32 %v537, %v620
        %v622 = vpop.f32.mrb[0].mxu0
        %623 = vmatprep.mubr.f32.mxu0 0.0
        %624 = vmatmul.mubr.f32.gmra.mrb[0].mxu0 %v504
        %v625 = vpop.f32.mrb[0].mxu0
        %v626 = vadd.f32 %v537, %v625
        %v627 = vpop.f32.mrb[0].mxu0
        %628 = vmatprep.mubr.f32.mxu0 0.0
        %629 = vmatmul.mubr.f32.gmra.mrb[0].mxu0 %v505
        %v630 = vpop.f32.mrb[0].mxu0
        %v631 = vadd.f32 %v537, %v630
        %v632 = vpop.f32.mrb[0].mxu0
        %633 = vmatprep.mubr.f32.mxu0 0.0
        %634 = vmatmul.mubr.f32.gmra.mrb[0].mxu0 %v506
        %v635 = vpop.f32.mrb[0].mxu0
        %v636 = vadd.f32 %v537, %v635
        %v637 = vpop.f32.mrb[0].mxu0
        %638 = vmatprep.mubr.f32.mxu0 0.0
        %639 = vmatmul.mubr.f32.gmra.mrb[0].mxu0 %v507
        %v640 = vpop.f32.mrb[0].mxu0
        %v641 = vadd.f32 %v537, %v640
        %v642 = vpop.f32.mrb[0].mxu0
        %643 = vmatprep.mubr.f32.mxu0 0.0
        %644 = vmatmul.mubr.f32.gmra.mrb[0].mxu0 %v508
        %v645 = vpop.f32.mrb[0].mxu0
        %v646 = vadd.f32 %v537, %v645
        %v647 = vpop.f32.mrb[0].mxu0
        %648 = vmatprep.mubr.f32.mxu0 0.0
        %649 = vmatmul.mubr.f32.gmra.mrb[0].mxu0 %v509
        %v650 = vpop.f32.mrb[0].mxu0
        %v651 = vadd.f32 %v537, %v650
        %v652 = vpop.f32.mrb[0].mxu0
        %653 = vmatprep.mubr.f32.mxu0 0.0
        %654 = vmatmul.mubr.f32.gmra.mrb[0].mxu0 %v510
        %v655 = vpop.f32.mrb[0].mxu0
        %v656 = vadd.f32 %v537, %v655
        %v657 = vpop.f32.mrb[0].mxu0
        %658 = vmatprep.mubr.f32.mxu0 0.0
        %659 = vmatmul.mubr.f32.gmra.mrb[0].mxu0 %v511
        %v660 = vpop.f32.mrb[0].mxu0
        %v661 = vadd.f32 %v537, %v660
        %v662 = vpop.f32.mrb[0].mxu0
        %663 = vmatprep.mubr.f32.mxu0 0.0
        %664 = vmatmul.mubr.f32.gmra.mrb[0].mxu0 %v512
        %v665 = vpop.f32.mrb[0].mxu0
        %v666 = vadd.f32 %v537, %v665
        %v667 = vpop.f32.mrb[0].mxu0
        %668 = vmatprep.mubr.f32.mxu0 0.0
        %669 = vmatmul.mubr.f32.gmra.mrb[0].mxu0 %v513
        %v670 = vpop.f32.mrb[0].mxu0
        %v671 = vadd.f32 %v537, %v670
        %v672 = vpop.f32.mrb[0].mxu0
        %673 = vmatprep.mubr.f32.mxu0 0.0
        %674 = vmatmul.mubr.f32.gmra.mrb[0].mxu0 %v514
        %v675 = vpop.f32.mrb[0].mxu0
        %v676 = vadd.f32 %v537, %v675
        %v677 = vpop.f32.mrb[0].mxu0
        %678 = vmatprep.mubr.f32.mxu0 0.0
        %679 = vmatmul.mubr.f32.gmra.mrb[0].mxu0 %v515
        %v680 = vpop.f32.mrb[0].mxu0
        %v681 = vadd.f32 %v537, %v680
        %v682 = vpop.f32.mrb[0].mxu0
        %683 = vdwg.mxu0
        %684 = vst [vmem:[%s435] sm:$0xff] %v606
        %685 = vst [vmem:[%s435 + $0x8] sm:$0xff] %v611
        %686 = vst [vmem:[%s435 + $0x10] sm:$0xff] %v616
        %687 = vst [vmem:[%s435 + $0x18] sm:$0xff] %v621
        %688 = vst [vmem:[%s435 + $0x20] sm:$0xff] %v626
        %689 = vst [vmem:[%s435 + $0x28] sm:$0xff] %v631
        %690 = vst [vmem:[%s435 + $0x30] sm:$0xff] %v636
        %691 = vst [vmem:[%s435 + $0x38] sm:$0xff] %v641
        %692 = vst [vmem:[%s435 + $0x40] sm:$0xff] %v646
        %693 = vst [vmem:[%s435 + $0x48] sm:$0xff] %v651
        %694 = vst [vmem:[%s435 + $0x50] sm:$0xff] %v656
        %695 = vst [vmem:[%s435 + $0x58] sm:$0xff] %v661
        %696 = vst [vmem:[%s435 + $0x60] sm:$0xff] %v666
        %697 = vst [vmem:[%s435 + $0x68] sm:$0xff] %v671
        %698 = vst [vmem:[%s435 + $0x70] sm:$0xff] %v676
        %699 = vst [vmem:[%s435 + $0x78] sm:$0xff] %v681
        %v700 = vld [vmem:[#allocation11] sm:$0xff]
        %v701 = vld [vmem:[#allocation11 + $0x8] sm:$0xff]
        %v702 = vld [vmem:[#allocation11 + $0x10] sm:$0xff]
        %v703 = vld [vmem:[#allocation11 + $0x18] sm:$0xff]
        %v704 = vld [vmem:[#allocation11 + $0x20] sm:$0xff]
        %v705 = vld [vmem:[#allocation11 + $0x28] sm:$0xff]
        %v706 = vld [vmem:[#allocation11 + $0x30] sm:$0xff]
        %v707 = vld [vmem:[#allocation11 + $0x38] sm:$0xff]
        %v708 = vld [vmem:[#allocation11 + $0x40] sm:$0xff]
        %v709 = vld [vmem:[#allocation11 + $0x48] sm:$0xff]
        %v710 = vld [vmem:[#allocation11 + $0x50] sm:$0xff]
        %v711 = vld [vmem:[#allocation11 + $0x58] sm:$0xff]
        %v712 = vld [vmem:[#allocation11 + $0x60] sm:$0xff]
        %v713 = vld [vmem:[#allocation11 + $0x68] sm:$0xff]
        %v714 = vld [vmem:[#allocation11 + $0x70] sm:$0xff]
        %v715 = vld [vmem:[#allocation11 + $0x78] sm:$0xff]
        %716 = vmatprep.subr.mxu0 0.0
        %717 = vmatpush1.msra.mxu0 %v700
        %718 = vmatprep.subr.mxu0 0.0
        %719 = vmatpush1.msra.mxu0 %v701
        %720 = vmatprep.subr.mxu0 0.0
        %721 = vmatpush1.msra.mxu0 %v702
        %722 = vmatprep.subr.mxu0 0.0
        %723 = vmatpush1.msra.mxu0 %v703
        %724 = vmatprep.subr.mxu0 0.0
        %725 = vmatpush1.msra.mxu0 %v704
        %726 = vmatprep.subr.mxu0 0.0
        %727 = vmatpush1.msra.mxu0 %v705
        %728 = vmatprep.subr.mxu0 0.0
        %729 = vmatpush1.msra.mxu0 %v706
        %730 = vmatprep.subr.mxu0 0.0
        %731 = vmatpush1.msra.mxu0 %v707
        %732 = vmatprep.subr.mxu0 0.0
        %733 = vmatpush1.msra.mxu0 %v708
        %734 = vmatprep.subr.mxu0 0.0
        %735 = vmatpush1.msra.mxu0 %v709
        %736 = vmatprep.subr.mxu0 0.0
        %737 = vmatpush1.msra.mxu0 %v710
        %738 = vmatprep.subr.mxu0 0.0
        %739 = vmatpush1.msra.mxu0 %v711
        %740 = vmatprep.subr.mxu0 0.0
        %741 = vmatpush1.msra.mxu0 %v712
        %742 = vmatprep.subr.mxu0 0.0
        %743 = vmatpush1.msra.mxu0 %v713
        %744 = vmatprep.subr.mxu0 0.0
        %745 = vmatpush1.msra.mxu0 %v714
        %746 = vmatprep.subr.mxu0 0.0
        %747 = vmatpush1.msra.mxu0 %v715
        %748 = vmatprep.subr.mxu0 0.0
        %749 = vmatpush1.msra.mxu0 0.0
        %750 = vmatprep.subr.mxu0 0.0
        %751 = vmatpush1.msra.mxu0 0.0
        %752 = vmatprep.subr.mxu0 0.0
        %753 = vmatpush1.msra.mxu0 0.0
        %754 = vmatprep.subr.mxu0 0.0
        %755 = vmatpush1.msra.mxu0 0.0
        %756 = vmatprep.subr.mxu0 0.0
        %757 = vmatpush1.msra.mxu0 0.0
        %758 = vmatprep.subr.mxu0 0.0
        %759 = vmatpush1.msra.mxu0 0.0
        %760 = vmatprep.subr.mxu0 0.0
        %761 = vmatpush1.msra.mxu0 0.0
        %762 = vmatprep.subr.mxu0 0.0
        %763 = vmatpush1.msra.mxu0 0.0
        %764 = vmatprep.subr.mxu0 0.0
        %765 = vmatpush1.msra.mxu0 0.0
        %766 = vmatprep.subr.mxu0 0.0
        %767 = vmatpush1.msra.mxu0 0.0
        %768 = vmatprep.subr.mxu0 0.0
        %769 = vmatpush1.msra.mxu0 0.0
        %770 = vmatprep.subr.mxu0 0.0
        %771 = vmatpush1.msra.mxu0 0.0
        %772 = vmatprep.subr.mxu0 0.0
        %773 = vmatpush1.msra.mxu0 0.0
        %774 = vmatprep.subr.mxu0 0.0
        %775 = vmatpush1.msra.mxu0 0.0
        %776 = vmatprep.subr.mxu0 0.0
        %777 = vmatpush1.msra.mxu0 0.0
        %778 = vmatprep.subr.mxu0 0.0
        %779 = vmatpush1.msra.mxu0 0.0
        %780 = vmatprep.mubr.f32.mxu0 0.0
        %781 = vmatmul.mubr.f32.gmra.mrb[0].mxu0 %v500
        %v782 = vpop.f32.mrb[0].mxu0
        %v783 = vadd.f32 0.0, %v782
        %v784 = vpop.f32.mrb[0].mxu0
        %785 = vmatprep.mubr.f32.mxu0 0.0
        %786 = vmatmul.mubr.f32.gmra.mrb[0].mxu0 %v501
        %v787 = vpop.f32.mrb[0].mxu0
        %v788 = vadd.f32 0.0, %v787
        %v789 = vpop.f32.mrb[0].mxu0
        %790 = vmatprep.mubr.f32.mxu0 0.0
        %791 = vmatmul.mubr.f32.gmra.mrb[0].mxu0 %v502
        %v792 = vpop.f32.mrb[0].mxu0
        %v793 = vadd.f32 0.0, %v792
        %v794 = vpop.f32.mrb[0].mxu0
        %795 = vmatprep.mubr.f32.mxu0 0.0
        %796 = vmatmul.mubr.f32.gmra.mrb[0].mxu0 %v503
        %v797 = vpop.f32.mrb[0].mxu0
        %v798 = vadd.f32 0.0, %v797
        %v799 = vpop.f32.mrb[0].mxu0
        %800 = vmatprep.mubr.f32.mxu0 0.0
        %801 = vmatmul.mubr.f32.gmra.mrb[0].mxu0 %v504
        %v802 = vpop.f32.mrb[0].mxu0
        %v803 = vadd.f32 0.0, %v802
        %v804 = vpop.f32.mrb[0].mxu0
        %805 = vmatprep.mubr.f32.mxu0 0.0
        %806 = vmatmul.mubr.f32.gmra.mrb[0].mxu0 %v505
        %v807 = vpop.f32.mrb[0].mxu0
        %v808 = vadd.f32 0.0, %v807
        %v809 = vpop.f32.mrb[0].mxu0
        %810 = vmatprep.mubr.f32.mxu0 0.0
        %811 = vmatmul.mubr.f32.gmra.mrb[0].mxu0 %v506
        %v812 = vpop.f32.mrb[0].mxu0
        %v813 = vadd.f32 0.0, %v812
        %v814 = vpop.f32.mrb[0].mxu0
        %815 = vmatprep.mubr.f32.mxu0 0.0
        %816 = vmatmul.mubr.f32.gmra.mrb[0].mxu0 %v507
        %v817 = vpop.f32.mrb[0].mxu0
        %v818 = vadd.f32 0.0, %v817
        %v819 = vpop.f32.mrb[0].mxu0
        %820 = vmatprep.mubr.f32.mxu0 0.0
        %821 = vmatmul.mubr.f32.gmra.mrb[0].mxu0 %v508
        %v822 = vpop.f32.mrb[0].mxu0
        %v823 = vadd.f32 0.0, %v822
        %v824 = vpop.f32.mrb[0].mxu0
        %825 = vmatprep.mubr.f32.mxu0 0.0
        %826 = vmatmul.mubr.f32.gmra.mrb[0].mxu0 %v509
        %v827 = vpop.f32.mrb[0].mxu0
        %v828 = vadd.f32 0.0, %v827
        %v829 = vpop.f32.mrb[0].mxu0
        %830 = vmatprep.mubr.f32.mxu0 0.0
        %831 = vmatmul.mubr.f32.gmra.mrb[0].mxu0 %v510
        %v832 = vpop.f32.mrb[0].mxu0
        %v833 = vadd.f32 0.0, %v832
        %v834 = vpop.f32.mrb[0].mxu0
        %835 = vmatprep.mubr.f32.mxu0 0.0
        %836 = vmatmul.mubr.f32.gmra.mrb[0].mxu0 %v511
        %v837 = vpop.f32.mrb[0].mxu0
        %v838 = vadd.f32 0.0, %v837
        %v839 = vpop.f32.mrb[0].mxu0
        %840 = vmatprep.mubr.f32.mxu0 0.0
        %841 = vmatmul.mubr.f32.gmra.mrb[0].mxu0 %v512
        %v842 = vpop.f32.mrb[0].mxu0
        %v843 = vadd.f32 0.0, %v842
        %v844 = vpop.f32.mrb[0].mxu0
        %845 = vmatprep.mubr.f32.mxu0 0.0
        %846 = vmatmul.mubr.f32.gmra.mrb[0].mxu0 %v513
        %v847 = vpop.f32.mrb[0].mxu0
        %v848 = vadd.f32 0.0, %v847
        %v849 = vpop.f32.mrb[0].mxu0
        %850 = vmatprep.mubr.f32.mxu0 0.0
        %851 = vmatmul.mubr.f32.gmra.mrb[0].mxu0 %v514
        %v852 = vpop.f32.mrb[0].mxu0
        %v853 = vadd.f32 0.0, %v852
        %v854 = vpop.f32.mrb[0].mxu0
        %855 = vmatprep.mubr.f32.mxu0 0.0
        %856 = vmatmul.mubr.f32.gmra.mrb[0].mxu0 %v515
        %v857 = vpop.f32.mrb[0].mxu0
        %v858 = vadd.f32 0.0, %v857
        %v859 = vpop.f32.mrb[0].mxu0
        %860 = vdwg.mxu0
        %861 = vst [vmem:[%s442] sm:$0xff] %v783
        %862 = vst [vmem:[%s442 + $0x8] sm:$0xff] %v788
        %863 = vst [vmem:[%s442 + $0x10] sm:$0xff] %v793
        %864 = vst [vmem:[%s442 + $0x18] sm:$0xff] %v798
        %865 = vst [vmem:[%s442 + $0x20] sm:$0xff] %v803
        %866 = vst [vmem:[%s442 + $0x28] sm:$0xff] %v808
        %867 = vst [vmem:[%s442 + $0x30] sm:$0xff] %v813
        %868 = vst [vmem:[%s442 + $0x38] sm:$0xff] %v818
        %869 = vst [vmem:[%s442 + $0x40] sm:$0xff] %v823
        %870 = vst [vmem:[%s442 + $0x48] sm:$0xff] %v828
        %871 = vst [vmem:[%s442 + $0x50] sm:$0xff] %v833
        %872 = vst [vmem:[%s442 + $0x58] sm:$0xff] %v838
        %873 = vst [vmem:[%s442 + $0x60] sm:$0xff] %v843
        %874 = vst [vmem:[%s442 + $0x68] sm:$0xff] %v848
        %875 = vst [vmem:[%s442 + $0x70] sm:$0xff] %v853
        %876 = vst [vmem:[%s442 + $0x78] sm:$0xff] %v858
        %v877 = vld [vmem:[#allocation13] sm:$0xff]
        %v878 = vld [vmem:[#allocation13 + $0x8] sm:$0xff]
        %v879 = vld [vmem:[#allocation13 + $0x10] sm:$0xff]
        %v880 = vld [vmem:[#allocation13 + $0x18] sm:$0xff]
        %v881 = vld [vmem:[#allocation13 + $0x20] sm:$0xff]
        %v882 = vld [vmem:[#allocation13 + $0x28] sm:$0xff]
        %v883 = vld [vmem:[#allocation13 + $0x30] sm:$0xff]
        %v884 = vld [vmem:[#allocation13 + $0x38] sm:$0xff]
        %v885 = vld [vmem:[#allocation13 + $0x40] sm:$0xff]
        %v886 = vld [vmem:[#allocation13 + $0x48] sm:$0xff]
        %v887 = vld [vmem:[#allocation13 + $0x50] sm:$0xff]
        %v888 = vld [vmem:[#allocation13 + $0x58] sm:$0xff]
        %v889 = vld [vmem:[#allocation13 + $0x60] sm:$0xff]
        %v890 = vld [vmem:[#allocation13 + $0x68] sm:$0xff]
        %v891 = vld [vmem:[#allocation13 + $0x70] sm:$0xff]
        %v892 = vld [vmem:[#allocation13 + $0x78] sm:$0xff]
        %893 = vmatprep.subr.mxu0 0.0
        %894 = vmatpush1.msra.mxu0 %v877
        %895 = vmatprep.subr.mxu0 0.0
        %896 = vmatpush1.msra.mxu0 %v878
        %897 = vmatprep.subr.mxu0 0.0
        %898 = vmatpush1.msra.mxu0 %v879
        %899 = vmatprep.subr.mxu0 0.0
        %900 = vmatpush1.msra.mxu0 %v880
        %901 = vmatprep.subr.mxu0 0.0
        %902 = vmatpush1.msra.mxu0 %v881
        %903 = vmatprep.subr.mxu0 0.0
        %904 = vmatpush1.msra.mxu0 %v882
        %905 = vmatprep.subr.mxu0 0.0
        %906 = vmatpush1.msra.mxu0 %v883
        %907 = vmatprep.subr.mxu0 0.0
        %908 = vmatpush1.msra.mxu0 %v884
        %909 = vmatprep.subr.mxu0 0.0
        %910 = vmatpush1.msra.mxu0 %v885
        %911 = vmatprep.subr.mxu0 0.0
        %912 = vmatpush1.msra.mxu0 %v886
        %913 = vmatprep.subr.mxu0 0.0
        %914 = vmatpush1.msra.mxu0 %v887
        %915 = vmatprep.subr.mxu0 0.0
        %916 = vmatpush1.msra.mxu0 %v888
        %917 = vmatprep.subr.mxu0 0.0
        %918 = vmatpush1.msra.mxu0 %v889
        %919 = vmatprep.subr.mxu0 0.0
        %920 = vmatpush1.msra.mxu0 %v890
        %921 = vmatprep.subr.mxu0 0.0
        %922 = vmatpush1.msra.mxu0 %v891
        %923 = vmatprep.subr.mxu0 0.0
        %924 = vmatpush1.msra.mxu0 %v892
        %925 = vmatprep.subr.mxu0 0.0
        %926 = vmatpush1.msra.mxu0 0.0
        %927 = vmatprep.subr.mxu0 0.0
        %928 = vmatpush1.msra.mxu0 0.0
        %929 = vmatprep.subr.mxu0 0.0
        %930 = vmatpush1.msra.mxu0 0.0
        %931 = vmatprep.subr.mxu0 0.0
        %932 = vmatpush1.msra.mxu0 0.0
        %933 = vmatprep.subr.mxu0 0.0
        %934 = vmatpush1.msra.mxu0 0.0
        %935 = vmatprep.subr.mxu0 0.0
        %936 = vmatpush1.msra.mxu0 0.0
        %937 = vmatprep.subr.mxu0 0.0
        %938 = vmatpush1.msra.mxu0 0.0
        %939 = vmatprep.subr.mxu0 0.0
        %940 = vmatpush1.msra.mxu0 0.0
        %941 = vmatprep.subr.mxu0 0.0
        %942 = vmatpush1.msra.mxu0 0.0
        %943 = vmatprep.subr.mxu0 0.0
        %944 = vmatpush1.msra.mxu0 0.0
        %945 = vmatprep.subr.mxu0 0.0
        %946 = vmatpush1.msra.mxu0 0.0
        %947 = vmatprep.subr.mxu0 0.0
        %948 = vmatpush1.msra.mxu0 0.0
        %949 = vmatprep.subr.mxu0 0.0
        %950 = vmatpush1.msra.mxu0 0.0
        %951 = vmatprep.subr.mxu0 0.0
        %952 = vmatpush1.msra.mxu0 0.0
        %953 = vmatprep.subr.mxu0 0.0
        %954 = vmatpush1.msra.mxu0 0.0
        %955 = vmatprep.subr.mxu0 0.0
        %956 = vmatpush1.msra.mxu0 0.0
        %957 = vmatprep.mubr.f32.mxu0 0.0
        %958 = vmatmul.mubr.f32.gmra.mrb[0].mxu0 %v500
        %v959 = vpop.f32.mrb[0].mxu0
        %v960 = vadd.f32 0.0, %v959
        %v961 = vpop.f32.mrb[0].mxu0
        %962 = vmatprep.mubr.f32.mxu0 0.0
        %963 = vmatmul.mubr.f32.gmra.mrb[0].mxu0 %v501
        %v964 = vpop.f32.mrb[0].mxu0
        %v965 = vadd.f32 0.0, %v964
        %v966 = vpop.f32.mrb[0].mxu0
        %967 = vmatprep.mubr.f32.mxu0 0.0
        %968 = vmatmul.mubr.f32.gmra.mrb[0].mxu0 %v502
        %v969 = vpop.f32.mrb[0].mxu0
        %v970 = vadd.f32 0.0, %v969
        %v971 = vpop.f32.mrb[0].mxu0
        %972 = vmatprep.mubr.f32.mxu0 0.0
        %973 = vmatmul.mubr.f32.gmra.mrb[0].mxu0 %v503
        %v974 = vpop.f32.mrb[0].mxu0
        %v975 = vadd.f32 0.0, %v974
        %v976 = vpop.f32.mrb[0].mxu0
        %977 = vmatprep.mubr.f32.mxu0 0.0
        %978 = vmatmul.mubr.f32.gmra.mrb[0].mxu0 %v504
        %v979 = vpop.f32.mrb[0].mxu0
        %v980 = vadd.f32 0.0, %v979
        %v981 = vpop.f32.mrb[0].mxu0
        %982 = vmatprep.mubr.f32.mxu0 0.0
        %983 = vmatmul.mubr.f32.gmra.mrb[0].mxu0 %v505
        %v984 = vpop.f32.mrb[0].mxu0
        %v985 = vadd.f32 0.0, %v984
        %v986 = vpop.f32.mrb[0].mxu0
        %987 = vmatprep.mubr.f32.mxu0 0.0
        %988 = vmatmul.mubr.f32.gmra.mrb[0].mxu0 %v506
        %v989 = vpop.f32.mrb[0].mxu0
        %v990 = vadd.f32 0.0, %v989
        %v991 = vpop.f32.mrb[0].mxu0
        %992 = vmatprep.mubr.f32.mxu0 0.0
        %993 = vmatmul.mubr.f32.gmra.mrb[0].mxu0 %v507
        %v994 = vpop.f32.mrb[0].mxu0
        %v995 = vadd.f32 0.0, %v994
        %v996 = vpop.f32.mrb[0].mxu0
        %997 = vmatprep.mubr.f32.mxu0 0.0
        %998 = vmatmul.mubr.f32.gmra.mrb[0].mxu0 %v508
        %v999 = vpop.f32.mrb[0].mxu0
        %v1000 = vadd.f32 0.0, %v999
        %v1001 = vpop.f32.mrb[0].mxu0
        %1002 = vmatprep.mubr.f32.mxu0 0.0
        %1003 = vmatmul.mubr.f32.gmra.mrb[0].mxu0 %v509
        %v1004 = vpop.f32.mrb[0].mxu0
        %v1005 = vadd.f32 0.0, %v1004
        %v1006 = vpop.f32.mrb[0].mxu0
        %1007 = vmatprep.mubr.f32.mxu0 0.0
        %1008 = vmatmul.mubr.f32.gmra.mrb[0].mxu0 %v510
        %v1009 = vpop.f32.mrb[0].mxu0
        %v1010 = vadd.f32 0.0, %v1009
        %v1011 = vpop.f32.mrb[0].mxu0
        %1012 = vmatprep.mubr.f32.mxu0 0.0
        %1013 = vmatmul.mubr.f32.gmra.mrb[0].mxu0 %v511
        %v1014 = vpop.f32.mrb[0].mxu0
        %v1015 = vadd.f32 0.0, %v1014
        %v1016 = vpop.f32.mrb[0].mxu0
        %1017 = vmatprep.mubr.f32.mxu0 0.0
        %1018 = vmatmul.mubr.f32.gmra.mrb[0].mxu0 %v512
        %v1019 = vpop.f32.mrb[0].mxu0
        %v1020 = vadd.f32 0.0, %v1019
        %v1021 = vpop.f32.mrb[0].mxu0
        %1022 = vmatprep.mubr.f32.mxu0 0.0
        %1023 = vmatmul.mubr.f32.gmra.mrb[0].mxu0 %v513
        %v1024 = vpop.f32.mrb[0].mxu0
        %v1025 = vadd.f32 0.0, %v1024
        %v1026 = vpop.f32.mrb[0].mxu0
        %1027 = vmatprep.mubr.f32.mxu0 0.0
        %1028 = vmatmul.mubr.f32.gmra.mrb[0].mxu0 %v514
        %v1029 = vpop.f32.mrb[0].mxu0
        %v1030 = vadd.f32 0.0, %v1029
        %v1031 = vpop.f32.mrb[0].mxu0
        %1032 = vmatprep.mubr.f32.mxu0 0.0
        %1033 = vmatmul.mubr.f32.gmra.mrb[0].mxu0 %v515
        %v1034 = vpop.f32.mrb[0].mxu0
        %v1035 = vadd.f32 0.0, %v1034
        %v1036 = vpop.f32.mrb[0].mxu0
        %1037 = vdwg.mxu0
        %1038 = vst [vmem:[%s449] sm:$0xff] %v960
        %1039 = vst [vmem:[%s449 + $0x8] sm:$0xff] %v965
        %1040 = vst [vmem:[%s449 + $0x10] sm:$0xff] %v970
        %1041 = vst [vmem:[%s449 + $0x18] sm:$0xff] %v975
        %1042 = vst [vmem:[%s449 + $0x20] sm:$0xff] %v980
        %1043 = vst [vmem:[%s449 + $0x28] sm:$0xff] %v985
        %1044 = vst [vmem:[%s449 + $0x30] sm:$0xff] %v990
        %1045 = vst [vmem:[%s449 + $0x38] sm:$0xff] %v995
        %1046 = vst [vmem:[%s449 + $0x40] sm:$0xff] %v1000
        %1047 = vst [vmem:[%s449 + $0x48] sm:$0xff] %v1005
        %1048 = vst [vmem:[%s449 + $0x50] sm:$0xff] %v1010
        %1049 = vst [vmem:[%s449 + $0x58] sm:$0xff] %v1015
        %1050 = vst [vmem:[%s449 + $0x60] sm:$0xff] %v1020
        %1051 = vst [vmem:[%s449 + $0x68] sm:$0xff] %v1025
        %1052 = vst [vmem:[%s449 + $0x70] sm:$0xff] %v1030
        %1053 = vst [vmem:[%s449 + $0x78] sm:$0xff] %v1035
        %s1054 = sand.u32 %s193, 1
        %s1055 = scalar_lea.sflag [#allocation4], %s1054
        %s1056 = sand.u32 %s193, 1
        %s1057 = smul.addr %s1056, 128
        %s1058 = scalar_lea.vmem [#allocation14], %s1057
        %s1059 = sand.u32 %s33, 1
        %s1060 = scalar_lea.sflag [#allocation16], %s1059
        %s1061 = sand.u32 %s219, 1
        %s1062 = smul.addr %s1061, 128
        %s1063 = scalar_lea.vmem [#allocation15], %s1062
        %s1064 = sand.u32 %s33, 1
        %s1065 = scalar_lea.sflag [#allocation16], %s1064
        %s1066 = sand.u32 %s245, 1
        %s1067 = smul.addr %s1066, 128
        %s1068 = scalar_lea.vmem [#allocation17], %s1067
        // Predicated region
        $region77: #{tpu_custom_call.1} parent=47 // pred_check
          %p1069 = pneg %p203
        $region78: #{tpu_custom_call.1} parent=47 // pred_check_branch
          %1071 = sbr.rel (%p1069) target = $region80
        $region79: #{tpu_custom_call.1} parent=47 // pred_region
          %s1072 = smul.u32 16, %s33
          %s1074 = ssub.s32 2048, 2048
          %1075 = vsyncadd %s1055, %s1074
          %s1076 = smul.addr %s1072, 128
          %s1077 = scalar_lea.hbm %s7, %s1076
          %s1078 = sshll.u32 %s1058, 4
          %s1079 = int_to_ptr.vmem [resolvable:$true] %s1078
          %1084 = dma.vmem_to_hbm [thread:$0]  %s1079, 2048, %s1077, %s1055, 128, 128, 8
        $region80: #{tpu_custom_call.1} parent=47 // pred_fallthru
          _
        // Predicated region
        $region81: #{tpu_custom_call.1} parent=47 // pred_check
          %p1085 = pneg %p229
        $region82: #{tpu_custom_call.1} parent=47 // pred_check_branch
          %1087 = sbr.rel (%p1085) target = $region84
        $region83: #{tpu_custom_call.1} parent=47 // pred_region
          %s1088 = smul.u32 16, %s33
          %s1090 = ssub.s32 2048, 2048
          %1091 = vsyncadd %s1060, %s1090
          %s1092 = smul.addr %s1088, 128
          %s1093 = scalar_lea.hbm %s8, %s1092
          %s1094 = sshll.u32 %s1063, 4
          %s1095 = int_to_ptr.vmem [resolvable:$true] %s1094
          %1100 = dma.vmem_to_hbm [thread:$0]  %s1095, 2048, %s1093, %s1060, 128, 128, 8
        $region84: #{tpu_custom_call.1} parent=47 // pred_fallthru
          _
        // Predicated region
        $region85: #{tpu_custom_call.1} parent=47 // pred_check
          %p1101 = pneg %p255
        $region86: #{tpu_custom_call.1} parent=47 // pred_check_branch
          %1103 = sbr.rel (%p1101) target = $region88
        $region87: #{tpu_custom_call.1} parent=47 // pred_region
          %s1104 = smul.u32 16, %s33
          %s1106 = ssub.s32 2048, 2048
          %1107 = vsyncadd %s1065, %s1106
          %s1108 = smul.addr %s1104, 128
          %s1109 = scalar_lea.hbm %s9, %s1108
          %s1110 = sshll.u32 %s1068, 4
          %s1111 = int_to_ptr.vmem [resolvable:$true] %s1110
          %1116 = dma.vmem_to_hbm [thread:$0]  %s1111, 2048, %s1109, %s1065, 128, 128, 8
        $region88: #{tpu_custom_call.1} parent=47 // pred_fallthru
          _
      $region48: #{tpu_custom_call.1} parent=5 // pred_fallthru
        _
      %p1117 = scmp.le.s32.totalorder 2, %s28
      // Predicated region
      $region89: #{tpu_custom_call.1} parent=5 // pred_check
        %p1118 = pneg %p1117
      $region90: #{tpu_custom_call.1} parent=5 // pred_check_branch
        %1120 = sbr.rel (%p1118) target = $region92
      $region91: #{tpu_custom_call.1} parent=5 // pred_region
        %s1121 = ssub.s32 %s28, 2
        // Predicated region
        $region93: #{tpu_custom_call.1} parent=91 // pred_check
          %p1122 = pneg %p209
        $region94: #{tpu_custom_call.1} parent=91 // pred_check_branch
          %1124 = sbr.rel (%p1122) target = $region96
        $region95: #{tpu_custom_call.1} parent=91 // pred_region
          %s1125 = sand.u32 %s194, 1
          %s1126 = scalar_lea.sflag [#allocation4], %s1125
          %s1127 = sand.u32 %s194, 1
          %s1128 = smul.addr %s1127, 128
          %s1129 = scalar_lea.vmem [#allocation14], %s1128
          %1130 = dma.done %s1126, 2048
        $region96: #{tpu_custom_call.1} parent=91 // pred_fallthru
          _
        // Predicated region
        $region97: #{tpu_custom_call.1} parent=91 // pred_check
          %p1131 = pneg %p235
        $region98: #{tpu_custom_call.1} parent=91 // pred_check_branch
          %1133 = sbr.rel (%p1131) target = $region100
        $region99: #{tpu_custom_call.1} parent=91 // pred_region
          %s1134 = sand.u32 %s34, 1
          %s1135 = scalar_lea.sflag [#allocation16], %s1134
          %s1136 = sand.u32 %s220, 1
          %s1137 = smul.addr %s1136, 128
          %s1138 = scalar_lea.vmem [#allocation15], %s1137
          %1139 = dma.done %s1135, 2048
        $region100: #{tpu_custom_call.1} parent=91 // pred_fallthru
          _
        // Predicated region
        $region101: #{tpu_custom_call.1} parent=91 // pred_check
          %p1140 = pneg %p261
        $region102: #{tpu_custom_call.1} parent=91 // pred_check_branch
          %1142 = sbr.rel (%p1140) target = $region104
        $region103: #{tpu_custom_call.1} parent=91 // pred_region
          %s1143 = sand.u32 %s34, 1
          %s1144 = scalar_lea.sflag [#allocation16], %s1143
          %s1145 = sand.u32 %s246, 1
          %s1146 = smul.addr %s1145, 128
          %s1147 = scalar_lea.vmem [#allocation17], %s1146
          %1148 = dma.done %s1144, 2048
        $region104: #{tpu_custom_call.1} parent=91 // pred_fallthru
          _
      $region92: #{tpu_custom_call.1} parent=5 // pred_fallthru
        _
    $region6: #{tpu_custom_call.1} parent=1 // loop_footer
      %s32 = sadd.s32 1, %s28
    $region7: #{tpu_custom_call.1} parent=1 // loop_footer_branch
      %27 = sbr.rel target = $region3
    $region8: #{tpu_custom_call.1} parent=1 // loop_exit
      _
    %1149 = vsyncpa [#allocation3], 1
    %s1150 = scalar_lea.sflag [#allocation3], 1
    %1151 = vsyncpa %s1150, 1
    %1152 = vsyncpa [#allocation6], 1
    %1153 = vsyncpa [#allocation9], 1
    %1154 = vsyncpa [#allocation12], 1
    %1155 = vsyncpa [#allocation4], 1
    %s1156 = scalar_lea.sflag [#allocation4], 1
    %1157 = vsyncpa %s1156, 1
    %1158 = vsyncpa [#allocation16], 1
    %s1159 = scalar_lea.sflag [#allocation16], 1
    %1160 = vsyncpa %s1159, 1

</llo_original>
